<compile_context>
chip_gen: v7x
topology: tpu7x:2x2x1
jax: 0.10.0
libtpu: 0.0.40
codegen_flags: <defaults>
</compile_context>

<pallas_src>
import functools
import itertools

import jax
import jax.numpy as jnp
import numpy as np
from jax import lax
from jax.experimental import pallas as pl
from jax.experimental.pallas import tpu as pltpu


def _round_up(x: int, m: int) -> int:
    return ((x + m - 1) // m) * m


def _choose_tile(n: int, align: int, cap: int):
    """Pick (tile, padded_size) with tile % align == 0, tile <= cap, and
    padded_size = tile * num_tiles kept minimal (avoids padding a dimension
    all the way up to a tile-cap multiple)."""
    n_al = _round_up(max(int(n), 1), align)
    if n_al <= cap:
        return n_al, n_al
    ntiles = -(-n_al // cap)                       # ceil
    tile = _round_up(-(-n_al // ntiles), align)    # <= cap since cap % align == 0
    return tile, tile * ntiles


def _make_cost_kernel(hm_match: float, hm_l1: float, hm_giou: float):
    def cost_kernel(emb_ref, gt_ref, b1_ref, b2_ref, out_ref):
        # --- matching cost: hm_match * (1 - emb @ gt.T) --------------------
        # gt_ref is [tn, D]; contract on the shared D axis (no wrapper-side
        # transpose of the GT embeddings; any vxpose lands on the idle XLU).
        dots = lax.dot_general(
            emb_ref[...],
            gt_ref[...],
            dimension_numbers=(((1,), (1,)), ((), ())),
            preferred_element_type=jnp.float32,
        )
        acc = hm_match - hm_match * dots            # running accumulator [tm, tn]

        b1 = b1_ref[...].astype(jnp.float32)        # [tm, 2]  (center, width)
        b2 = b2_ref[...].astype(jnp.float32)        # [2, tn]  (center; width)
        c1, w1 = b1[:, 0:1], b1[:, 1:2]             # [tm, 1]
        c2, w2 = b2[0:1, :], b2[1:2, :]             # [1, tn]

        # --- L1 (cdist, p=1) between (center, width) boxes ------------------
        acc = acc + hm_l1 * (jnp.abs(c1 - c2) + jnp.abs(w1 - w2))

        # --- generalized 1-D box IoU, folded hull form ----------------------
        # d = min(end1,end2) - max(start1,start2)  (signed overlap, unclamped)
        # inter = max(d,0); gap = inter - d = max(-d,0)
        # union = w1 + w2 - inter; hull = w1 + w2 - d = max(e1,e2)-min(s1,s2)
        # (hull >= 0 for valid non-negative widths, matching the reference's
        #  clamp(min=0) on area)
        half_w1 = 0.5 * w1
        half_w2 = 0.5 * w2
        d = (jnp.minimum(c1 + half_w1, c2 + half_w2)
             - jnp.maximum(c1 - half_w1, c2 - half_w2))
        inter = jnp.maximum(d, 0.0)
        gap = inter - d
        sumw = w1 + w2
        union = sumw - inter
        hull = sumw - d

        # Divides routed to the EUP via approximate reciprocal (kernel is
        # VALU-bound; exact recip would add Newton steps on the VALU).
        inv_union = pl.reciprocal(union, approx=True)
        inv_hull = pl.reciprocal(hull, approx=True)

        # 0/0 lanes (padded zero boxes) produce NaN only in the non-selected
        # branch of the where; select-discard keeps them out. Do NOT refactor
        # into multiply-by-mask arithmetic.
        iou = jnp.where(union > 0.0, inter * inv_union, 0.0)
        # giou = iou - (hull - union)/hull = iou - gap/hull.
        # The hull>0 guard diverges from the PyTorch reference only for
        # coincident zero-width boxes (reference yields NaN there).
        giou = iou - jnp.where(hull > 0.0, gap * inv_hull, 0.0)

        out_ref[...] = (acc - hm_giou * giou).astype(out_ref.dtype)

    return cost_kernel


@functools.partial(jax.jit, static_argnames=("hm_match", "hm_l1", "hm_giou"))
def _cost_matrix_padded(
    moment_emb, moment_bbox, sfx_feat_gt, bbox_gt, hm_match=1.0, hm_l1=1.0, hm_giou=1.0
):
    """Gridded Pallas kernel producing the tile-padded [N_pad, M_pad] cost matrix."""
    N, D = moment_emb.shape
    M, D2 = sfx_feat_gt.shape
    assert D == D2, "embedding dims must match"

    # Tile caps: 512x2048 f32 output tile = 4 MiB, x2 pipeline buffers = 8 MiB
    # (+ small inputs) -> fits v5e's 16 MiB scoped-VMEM default and v7x's 64 MiB.
    TM_MAX, TN_MAX = 512, 2048

    tm, N_pad = _choose_tile(N, 8, TM_MAX)       # sublane alignment
    tn, M_pad = _choose_tile(M, 128, TN_MAX)     # lane-dense (unmasked vst) output

    # Matmul operands keep the caller's dtype (bf16 stays bf16; MXU accumulates
    # f32 either way).  Box math is f32.
    emb = jnp.pad(moment_emb, ((0, N_pad - N), (0, 0)))
    gt = jnp.pad(sfx_feat_gt, ((0, M_pad - M), (0, 0)))
    b1 = jnp.pad(moment_bbox.astype(jnp.float32), ((0, N_pad - N), (0, 0)))       # [N_pad, 2]
    b2t = jnp.pad(bbox_gt.astype(jnp.float32), ((0, M_pad - M), (0, 0))).T        # [2, M_pad]

    kernel = _make_cost_kernel(float(hm_match), float(hm_l1), float(hm_giou))
    grid = (N_pad // tm, M_pad // tn)

    return pl.pallas_call(
        kernel,
        out_shape=jax.ShapeDtypeStruct((N_pad, M_pad), jnp.float32),
        grid_spec=pltpu.PrefetchScalarGridSpec(
            num_scalar_prefetch=0,
            grid=grid,
            in_specs=[
                pl.BlockSpec((tm, D), lambda i, j: (i, 0)),   # query embeddings
                pl.BlockSpec((tn, D), lambda i, j: (j, 0)),   # gt embeddings (RHS, untransposed)
                pl.BlockSpec((tm, 2), lambda i, j: (i, 0)),   # query boxes (center,width)
                pl.BlockSpec((2, tn), lambda i, j: (0, j)),   # gt boxes, pre-transposed
            ],
            out_specs=pl.BlockSpec((tm, tn), lambda i, j: (i, j)),
        ),
        compiler_params=pltpu.CompilerParams(
            dimension_semantics=("parallel", "parallel"),  # shardable across v7x's 2 TCs
        ),
    )(emb, gt, b1, b2t)


def hungarian_cost_matrix(
    moment_emb, moment_bbox, sfx_feat_gt, bbox_gt, hm_match=1.0, hm_l1=1.0, hm_giou=1.0
):
    """Returns the [N, M] cost matrix as a numpy array (host-side crop of the
    tile padding -> no extra on-device HBM pass just to slice)."""
    N = moment_emb.shape[0]
    M = sfx_feat_gt.shape[0]
    padded = _cost_matrix_padded(
        moment_emb, moment_bbox, sfx_feat_gt, bbox_gt,
        hm_match=float(hm_match), hm_l1=float(hm_l1), hm_giou=float(hm_giou),
    )
    padded = jax.block_until_ready(padded)
    return np.asarray(padded)[:N, :M]


def _linear_sum_assignment_host(cost_np):
    """Hungarian assignment on host (scipy if available, brute force fallback)."""
    try:
        from scipy.optimize import linear_sum_assignment

        row, col = linear_sum_assignment(cost_np)
        return np.asarray(row, dtype=np.int64), np.asarray(col, dtype=np.int64)
    except Exception:
        # Brute-force fallback for small problems (N, M <= ~9-12).
        n, m = cost_np.shape
        if n <= m:
            best, best_perm = np.inf, None
            rows = np.arange(n)
            for perm in itertools.permutations(range(m), n):
                s = cost_np[rows, list(perm)].sum()
                if s < best:
                    best, best_perm = s, perm
            return rows.astype(np.int64), np.asarray(best_perm, dtype=np.int64)
        col, row = _linear_sum_assignment_host(cost_np.T)
        order = np.argsort(row)
        return row[order].astype(np.int64), col[order].astype(np.int64)


class HungarianMatcher:
    """JAX/Pallas port of the PyTorch HungarianMatcher (forward only)."""

    def __init__(self, HM_match=1, HM_l1=1, HM_giou=1):
        self.HM_match = HM_match
        self.HM_l1 = HM_l1
        self.HM_giou = HM_giou

    def __call__(self, moment_emb, moment_bbox, sfx_feat_gt, bbox_gt):
        cost = hungarian_cost_matrix(
            moment_emb, moment_bbox, sfx_feat_gt, bbox_gt,
            hm_match=float(self.HM_match),
            hm_l1=float(self.HM_l1),
            hm_giou=float(self.HM_giou),
        )
        # TODO(synk): linear_sum_assignment (Hungarian) is inherently sequential /
        # data-dependent; it runs on the host on the kernel-produced cost matrix.
        row, col = _linear_sum_assignment_host(cost)
        # PyTorch returns int64; JAX default config has x64 disabled -> int32.
        return jnp.asarray(row, dtype=jnp.int32), jnp.asarray(col, dtype=jnp.int32)


def _reference_cost(moment_emb, moment_bbox, sfx_feat_gt, bbox_gt, wm, wl, wg):
    """Pure-numpy reference reproducing the PyTorch semantics."""
    e = np.asarray(moment_emb, np.float32)
    g = np.asarray(sfx_feat_gt, np.float32)
    b1 = np.asarray(moment_bbox, np.float32)
    b2 = np.asarray(bbox_gt, np.float32)
    cost_match = 1.0 - e @ g.T
    cost_l1 = np.abs(b1[:, None, :] - b2[None, :, :]).sum(-1)
    s1 = b1[:, 0] - b1[:, 1] / 2
    s2 = b2[:, 0] - b2[:, 1] / 2
    e1 = b1[:, 0] + b1[:, 1] / 2
    e2 = b2[:, 0] + b2[:, 1] / 2
    lt = np.maximum(s1[:, None], s2)
    rb = np.minimum(e1[:, None], e2)
    inter = np.clip(rb - lt, 0, None)
    union = b1[:, 1][:, None] + b2[:, 1] - inter
    iou = np.where(union > 0, inter / np.where(union != 0, union, 1.0), 0.0)
    area = np.clip(np.maximum(e1[:, None], e2) - np.minimum(s1[:, None], s2), 0, None)
    giou = iou - (area - union) / area
    return wm * cost_match + wl * cost_l1 + wg * (-giou)


def _rand_boxes(key, n):
    kc, kw = jax.random.split(key)
    return jnp.stack(
        [jax.random.uniform(kc, (n,)), jax.random.uniform(kw, (n,)) * 0.4 + 0.05],
        axis=1,
    )


if __name__ == "__main__":
    key = jax.random.PRNGKey(0)
    k1, k2, k3, k4, k5, k6, k7, k8 = jax.random.split(key, 8)

    # Tolerance accounts for approx=True reciprocals (EUP estimate, ~1e-4 rel).
    RTOL = ATOL = 5e-3

    # --- case 1: the module's typical tiny shapes (N=M=8, D=32) -------------
    N, M, D = 8, 8, 32
    moment_emb = jax.random.normal(k1, (N, D), dtype=jnp.float32)
    sfx_feat_gt = jax.random.normal(k2, (M, D), dtype=jnp.float32)
    moment_bbox = _rand_boxes(k3, N)
    bbox_gt = _rand_boxes(k4, M)

    cost = hungarian_cost_matrix(moment_emb, moment_bbox, sfx_feat_gt, bbox_gt,
                                 hm_match=1.0, hm_l1=1.0, hm_giou=1.0)
    ref = _reference_cost(moment_emb, moment_bbox, sfx_feat_gt, bbox_gt, 1.0, 1.0, 1.0)
    np.testing.assert_allclose(cost, ref, rtol=RTOL, atol=ATOL)

    matcher = HungarianMatcher(HM_match=1, HM_l1=1, HM_giou=1)
    row_ind, col_ind = matcher(moment_emb, moment_bbox, sfx_feat_gt, bbox_gt)
    jax.block_until_ready((row_ind, col_ind))
    assert row_ind.shape == (min(N, M),) and col_ind.shape == (min(N, M),)

    # --- case 2: ragged shapes exercising the padding / host-crop path ------
    N2, M2 = 12, 5
    emb2 = jax.random.normal(k5, (N2, D), dtype=jnp.float32)
    gt2 = jax.random.normal(k6, (M2, D), dtype=jnp.float32)
    bb1 = _rand_boxes(k7, N2)
    bb2 = _rand_boxes(k8, M2)
    cost2 = hungarian_cost_matrix(emb2, bb1, gt2, bb2, hm_match=1.0, hm_l1=1.0, hm_giou=1.0)
    ref2 = _reference_cost(emb2, bb1, gt2, bb2, 1.0, 1.0, 1.0)
    assert cost2.shape == (N2, M2)
    np.testing.assert_allclose(cost2, ref2, rtol=RTOL, atol=ATOL)

    print("KERNEL_OK")
</pallas_src>

<mosaic_0001>
module attributes {stable_mosaic.version = 11 : i64} {
  func.func @cost_kernel(%arg0: i32, %arg1: i32, %arg2: memref<8x32xf32, #tpu.memory_space<vmem>>, %arg3: memref<128x32xf32, #tpu.memory_space<vmem>>, %arg4: memref<8x2xf32, #tpu.memory_space<vmem>>, %arg5: memref<2x128xf32, #tpu.memory_space<vmem>>, %arg6: memref<8x128xf32, #tpu.memory_space<vmem>>) attributes {dimension_semantics = [#tpu.dimension_semantics<parallel>, #tpu.dimension_semantics<parallel>], iteration_bounds = array<i64: 1, 1>, scalar_prefetch = 0 : i64, scratch_operands = 0 : i64, tpu.core_type = #tpu.core_type<tc>, window_params = [{transform_indices = @transform_0, window_bounds = array<i64: 8, 32>}, {transform_indices = @transform_1, window_bounds = array<i64: 128, 32>}, {transform_indices = @transform_2, window_bounds = array<i64: 8, 2>}, {transform_indices = @transform_3, window_bounds = array<i64: 2, 128>}, {transform_indices = @transform_4, window_bounds = array<i64: 8, 128>}]} {
    %c0 = arith.constant 0 : index
    %c0_0 = arith.constant 0 : index
    %0 = vector.load %arg2[%c0, %c0_0] : memref<8x32xf32, #tpu.memory_space<vmem>>, vector<8x32xf32>
    %c0_1 = arith.constant 0 : index
    %c0_2 = arith.constant 0 : index
    %1 = vector.load %arg3[%c0_1, %c0_2] : memref<128x32xf32, #tpu.memory_space<vmem>>, vector<128x32xf32>
    %cst = arith.constant dense<0.000000e+00> : vector<8x128xf32>
    %2 = tpu.matmul %0, %1, %cst {dimension_numbers = #tpu.dot_dimension_numbers<[1], [1], [0], [0], [0, 0, 1, 0], [], []>} : vector<8x32xf32>, vector<128x32xf32>, vector<8x128xf32> -> vector<8x128xf32>
    %cst_3 = arith.constant 1.000000e+00 : f32
    %3 = vector.broadcast %cst_3 : f32 to vector<8x128xf32>
    %4 = arith.mulf %3, %2 : vector<8x128xf32>
    %cst_4 = arith.constant 1.000000e+00 : f32
    %5 = vector.broadcast %cst_4 : f32 to vector<8x128xf32>
    %6 = arith.subf %5, %4 : vector<8x128xf32>
    %c0_5 = arith.constant 0 : index
    %c0_6 = arith.constant 0 : index
    %7 = vector.load %arg4[%c0_5, %c0_6] : memref<8x2xf32, #tpu.memory_space<vmem>>, vector<8x2xf32>
    %c0_7 = arith.constant 0 : index
    %c0_8 = arith.constant 0 : index
    %8 = vector.load %arg5[%c0_7, %c0_8] : memref<2x128xf32, #tpu.memory_space<vmem>>, vector<2x128xf32>
    %9 = vector.extract_strided_slice %7 {offsets = [0, 0], sizes = [8, 1], strides = [1, 1]} : vector<8x2xf32> to vector<8x1xf32>
    %10 = vector.extract_strided_slice %7 {offsets = [0, 1], sizes = [8, 1], strides = [1, 1]} : vector<8x2xf32> to vector<8x1xf32>
    %11 = vector.extract_strided_slice %8 {offsets = [0, 0], sizes = [1, 128], strides = [1, 1]} : vector<2x128xf32> to vector<1x128xf32>
    %12 = vector.extract_strided_slice %8 {offsets = [1, 0], sizes = [1, 128], strides = [1, 1]} : vector<2x128xf32> to vector<1x128xf32>
    %13 = vector.broadcast %9 : vector<8x1xf32> to vector<8x128xf32>
    %14 = vector.broadcast %11 : vector<1x128xf32> to vector<8x128xf32>
    %15 = arith.subf %13, %14 : vector<8x128xf32>
    %16 = math.absf %15 : vector<8x128xf32>
    %17 = vector.broadcast %10 : vector<8x1xf32> to vector<8x128xf32>
    %18 = vector.broadcast %12 : vector<1x128xf32> to vector<8x128xf32>
    %19 = arith.subf %17, %18 : vector<8x128xf32>
    %20 = math.absf %19 : vector<8x128xf32>
    %21 = arith.addf %16, %20 : vector<8x128xf32>
    %cst_9 = arith.constant 1.000000e+00 : f32
    %22 = vector.broadcast %cst_9 : f32 to vector<8x128xf32>
    %23 = arith.mulf %22, %21 : vector<8x128xf32>
    %24 = arith.addf %6, %23 : vector<8x128xf32>
    %cst_10 = arith.constant 5.000000e-01 : f32
    %25 = vector.broadcast %cst_10 : f32 to vector<8x1xf32>
    %26 = arith.mulf %25, %10 : vector<8x1xf32>
    %cst_11 = arith.constant 5.000000e-01 : f32
    %27 = vector.broadcast %cst_11 : f32 to vector<1x128xf32>
    %28 = arith.mulf %27, %12 : vector<1x128xf32>
    %29 = arith.addf %9, %26 : vector<8x1xf32>
    %30 = arith.addf %11, %28 : vector<1x128xf32>
    %31 = vector.broadcast %29 : vector<8x1xf32> to vector<8x128xf32>
    %32 = vector.broadcast %30 : vector<1x128xf32> to vector<8x128xf32>
    %33 = arith.minimumf %31, %32 : vector<8x128xf32>
    %34 = arith.subf %9, %26 : vector<8x1xf32>
    %35 = arith.subf %11, %28 : vector<1x128xf32>
    %36 = vector.broadcast %34 : vector<8x1xf32> to vector<8x128xf32>
    %37 = vector.broadcast %35 : vector<1x128xf32> to vector<8x128xf32>
    %38 = arith.maximumf %36, %37 : vector<8x128xf32>
    %39 = arith.subf %33, %38 : vector<8x128xf32>
    %cst_12 = arith.constant 0.000000e+00 : f32
    %40 = vector.broadcast %cst_12 : f32 to vector<8x128xf32>
    %41 = arith.maximumf %39, %40 : vector<8x128xf32>
    %42 = arith.subf %41, %39 : vector<8x128xf32>
    %43 = vector.broadcast %10 : vector<8x1xf32> to vector<8x128xf32>
    %44 = vector.broadcast %12 : vector<1x128xf32> to vector<8x128xf32>
    %45 = arith.addf %43, %44 : vector<8x128xf32>
    %46 = arith.subf %45, %41 : vector<8x128xf32>
    %47 = arith.subf %45, %39 : vector<8x128xf32>
    %48 = tpu.reciprocal %46 {approx = true} : vector<8x128xf32> -> vector<8x128xf32>
    %49 = tpu.reciprocal %47 {approx = true} : vector<8x128xf32> -> vector<8x128xf32>
    %cst_13 = arith.constant 0.000000e+00 : f32
    %50 = vector.broadcast %cst_13 : f32 to vector<8x128xf32>
    %51 = arith.cmpf ogt, %46, %50 : vector<8x128xf32>
    %52 = arith.mulf %41, %48 : vector<8x128xf32>
    %cst_14 = arith.constant 0.000000e+00 : f32
    %53 = vector.broadcast %cst_14 : f32 to vector<8x128xf32>
    %54 = arith.select %51, %52, %53 : vector<8x128xi1>, vector<8x128xf32>
    %cst_15 = arith.constant 0.000000e+00 : f32
    %55 = vector.broadcast %cst_15 : f32 to vector<8x128xf32>
    %56 = arith.cmpf ogt, %47, %55 : vector<8x128xf32>
    %57 = arith.mulf %42, %49 : vector<8x128xf32>
    %cst_16 = arith.constant 0.000000e+00 : f32
    %58 = vector.broadcast %cst_16 : f32 to vector<8x128xf32>
    %59 = arith.select %56, %57, %58 : vector<8x128xi1>, vector<8x128xf32>
    %60 = arith.subf %54, %59 : vector<8x128xf32>
    %cst_17 = arith.constant 1.000000e+00 : f32
    %61 = vector.broadcast %cst_17 : f32 to vector<8x128xf32>
    %62 = arith.mulf %61, %60 : vector<8x128xf32>
    %63 = arith.subf %24, %62 : vector<8x128xf32>
    %c0_18 = arith.constant 0 : index
    %c0_19 = arith.constant 0 : index
    %64 = vector.load %arg6[%c0_18, %c0_19] : memref<8x128xf32, #tpu.memory_space<vmem>>, vector<8x128xf32>
    tpu.vector_store %arg6[%c0_18, %c0_19], %63 {strides = array<i32>} : memref<8x128xf32, #tpu.memory_space<vmem>>, vector<8x128xf32>,
    return
  }
  func.func @transform_0(%arg0: i32, %arg1: i32) -> (i32, i32) {
    %c0_i32 = arith.constant 0 : i32
    %c0_i32_0 = arith.constant 0 : i32
    return %arg0, %c0_i32 : i32, i32
  }
  func.func @transform_1(%arg0: i32, %arg1: i32) -> (i32, i32) {
    %c0_i32 = arith.constant 0 : i32
    %c0_i32_0 = arith.constant 0 : i32
    return %arg1, %c0_i32 : i32, i32
  }
  func.func @transform_2(%arg0: i32, %arg1: i32) -> (i32, i32) {
    %c0_i32 = arith.constant 0 : i32
    %c0_i32_0 = arith.constant 0 : i32
    return %arg0, %c0_i32 : i32, i32
  }
  func.func @transform_3(%arg0: i32, %arg1: i32) -> (i32, i32) {
    %c0_i32 = arith.constant 0 : i32
    %c0_i32_0 = arith.constant 0 : i32
    return %c0_i32, %arg1 : i32, i32
  }
  func.func @transform_4(%arg0: i32, %arg1: i32) -> (i32, i32) {
    %c0_i32 = arith.constant 0 : i32
    return %arg0, %arg1 : i32, i32
  }
}

</mosaic_0001>

<llo_original>
// kernel: _cost_matrix_padded.1
$region0: #{_cost_matrix_padded.1}
  #allocation0 [shape = 'u32[]', space=smem, size = 0x4, offset = 0x4, fixed_abs, tag = 'smem constant byte address 0x4 - core index']
  #allocation1 [shape = 'u32[144,128]{1,0:T(1,128)}', space=vmem, size = 0x12000, scoped, tag = 'internal scratch']
  %s0 = inlined_call_operand.vmem [shape: f32[8,32], index: 0, kind: input, shape index: {}]
  %s1 = inlined_call_operand.vmem [shape: f32[128,32], index: 1, kind: input, shape index: {}]
  %s2 = inlined_call_operand.vmem [shape: f32[8,2], index: 2, kind: input, shape index: {}]
  %s3 = inlined_call_operand.vmem [shape: f32[2,128], index: 3, kind: input, shape index: {}]
  %s4 = inlined_call_operand.hbm [shape: f32[8,128], index: 4, kind: output, shape index: {}]
  %s5 = sld [smem:[#allocation0]]
  $region26: #{_cost_matrix_padded.1} parent=0
    _
  %s7 = ssub.s32 1, %s5
  %s8 = scalar_select 0, %s7, %s5
  $region1: #{_cost_matrix_padded.1} parent=0
    #allocation2 [shape = 'u8[4096]{0}', space=vmem, size = 0x1000, scoped, tag = 'output window, operand 0, single buffered']
    #allocation3 [shape = 's32[1]{0}', space=sflag, size = 0x4, scoped, tag = 'scoped memory for _cost_matrix_padded.1']
    %9 = vsyncpa [#allocation3], 0
    // Predicated region
    $region2: #{_cost_matrix_padded.1} parent=1 // pred_check
      _
    $region3: #{_cost_matrix_padded.1} parent=1 // pred_check_branch
      %11 = sbr.rel (0) target = $region5
    $region4: #{_cost_matrix_padded.1} parent=1 // pred_region
      _
    $region5: #{_cost_matrix_padded.1} parent=1 // pred_fallthru
      _
    // Predicated region
    $region6: #{_cost_matrix_padded.1} parent=1 // pred_check
      _
    $region7: #{_cost_matrix_padded.1} parent=1 // pred_check_branch
      %13 = sbr.rel (0) target = $region9
    $region8: #{_cost_matrix_padded.1} parent=1 // pred_region
      _
    $region9: #{_cost_matrix_padded.1} parent=1 // pred_fallthru
      _
    // Predicated region
    $region10: #{_cost_matrix_padded.1} parent=1 // pred_check
      _
    $region11: #{_cost_matrix_padded.1} parent=1 // pred_check_branch
      %15 = sbr.rel (0) target = $region13
    $region12: #{_cost_matrix_padded.1} parent=1 // pred_region
      _
    $region13: #{_cost_matrix_padded.1} parent=1 // pred_fallthru
      _
    // Predicated region
    $region14: #{_cost_matrix_padded.1} parent=1 // pred_check
      _
    $region15: #{_cost_matrix_padded.1} parent=1 // pred_check_branch
      %17 = sbr.rel (0) target = $region17
    $region16: #{_cost_matrix_padded.1} parent=1 // pred_region
      _
    $region17: #{_cost_matrix_padded.1} parent=1 // pred_fallthru
      _
    %v18 = vld [vmem:[%s0] sm:$0xff]
    %v19 = vld [vmem:[%s1] sm:$0xff]
    %v20 = vld [vmem:[%s1 + $0x8] sm:$0xff]
    %v21 = vld [vmem:[%s1 + $0x10] sm:$0xff]
    %v22 = vld [vmem:[%s1 + $0x18] sm:$0xff]
    %v23 = vld [vmem:[%s1 + $0x20] sm:$0xff]
    %v24 = vld [vmem:[%s1 + $0x28] sm:$0xff]
    %v25 = vld [vmem:[%s1 + $0x30] sm:$0xff]
    %v26 = vld [vmem:[%s1 + $0x38] sm:$0xff]
    %v27 = vld [vmem:[%s1 + $0x40] sm:$0xff]
    %v28 = vld [vmem:[%s1 + $0x48] sm:$0xff]
    %v29 = vld [vmem:[%s1 + $0x50] sm:$0xff]
    %v30 = vld [vmem:[%s1 + $0x58] sm:$0xff]
    %v31 = vld [vmem:[%s1 + $0x60] sm:$0xff]
    %v32 = vld [vmem:[%s1 + $0x68] sm:$0xff]
    %v33 = vld [vmem:[%s1 + $0x70] sm:$0xff]
    %v34 = vld [vmem:[%s1 + $0x78] sm:$0xff]
    %vm35 = vcmask 261120
    %v37 = vsel %vm35, %v18, 0
    %v40 = vsel %vm35, %v19, 0
    %v43 = vsel %vm35, %v20, 0
    %v46 = vsel %vm35, %v21, 0
    %v49 = vsel %vm35, %v22, 0
    %v52 = vsel %vm35, %v23, 0
    %v55 = vsel %vm35, %v24, 0
    %v58 = vsel %vm35, %v25, 0
    %v61 = vsel %vm35, %v26, 0
    %v64 = vsel %vm35, %v27, 0
    %v67 = vsel %vm35, %v28, 0
    %v70 = vsel %vm35, %v29, 0
    %v73 = vsel %vm35, %v30, 0
    %v76 = vsel %vm35, %v31, 0
    %v79 = vsel %vm35, %v32, 0
    %v82 = vsel %vm35, %v33, 0
    %v85 = vsel %vm35, %v34, 0
    %87 = vmatprep.subr.mxu0 0.0
    %88 = vmatpush1.xpose.msra.mxu0 %v40
    %89 = vmatprep.subr.mxu0 0.0
    %90 = vmatpush1.xpose.msra.mxu0 %v43
    %91 = vmatprep.subr.mxu0 0.0
    %92 = vmatpush1.xpose.msra.mxu0 %v46
    %93 = vmatprep.subr.mxu0 0.0
    %94 = vmatpush1.xpose.msra.mxu0 %v49
    %95 = vmatprep.subr.mxu0 0.0
    %96 = vmatpush1.xpose.msra.mxu0 %v52
    %97 = vmatprep.subr.mxu0 0.0
    %98 = vmatpush1.xpose.msra.mxu0 %v55
    %99 = vmatprep.subr.mxu0 0.0
    %100 = vmatpush1.xpose.msra.mxu0 %v58
    %101 = vmatprep.subr.mxu0 0.0
    %102 = vmatpush1.xpose.msra.mxu0 %v61
    %103 = vmatprep.subr.mxu0 0.0
    %104 = vmatpush1.xpose.msra.mxu0 %v64
    %105 = vmatprep.subr.mxu0 0.0
    %106 = vmatpush1.xpose.msra.mxu0 %v67
    %107 = vmatprep.subr.mxu0 0.0
    %108 = vmatpush1.xpose.msra.mxu0 %v70
    %109 = vmatprep.subr.mxu0 0.0
    %110 = vmatpush1.xpose.msra.mxu0 %v73
    %111 = vmatprep.subr.mxu0 0.0
    %112 = vmatpush1.xpose.msra.mxu0 %v76
    %113 = vmatprep.subr.mxu0 0.0
    %114 = vmatpush1.xpose.msra.mxu0 %v79
    %115 = vmatprep.subr.mxu0 0.0
    %116 = vmatpush1.xpose.msra.mxu0 %v82
    %117 = vmatprep.subr.mxu0 0.0
    %118 = vmatpush1.xpose.msra.mxu0 %v85
    %119 = vmatprep.subr.mxu0 0.0
    %120 = vmatpush1.xpose.msra.mxu0 0.0
    %121 = vmatprep.subr.mxu0 0.0
    %122 = vmatpush1.xpose.msra.mxu0 0.0
    %123 = vmatprep.subr.mxu0 0.0
    %124 = vmatpush1.xpose.msra.mxu0 0.0
    %125 = vmatprep.subr.mxu0 0.0
    %126 = vmatpush1.xpose.msra.mxu0 0.0
    %127 = vmatprep.subr.mxu0 0.0
    %128 = vmatpush1.xpose.msra.mxu0 0.0
    %129 = vmatprep.subr.mxu0 0.0
    %130 = vmatpush1.xpose.msra.mxu0 0.0
    %131 = vmatprep.subr.mxu0 0.0
    %132 = vmatpush1.xpose.msra.mxu0 0.0
    %133 = vmatprep.subr.mxu0 0.0
    %134 = vmatpush1.xpose.msra.mxu0 0.0
    %135 = vmatprep.subr.mxu0 0.0
    %136 = vmatpush1.xpose.msra.mxu0 0.0
    %137 = vmatprep.subr.mxu0 0.0
    %138 = vmatpush1.xpose.msra.mxu0 0.0
    %139 = vmatprep.subr.mxu0 0.0
    %140 = vmatpush1.xpose.msra.mxu0 0.0
    %141 = vmatprep.subr.mxu0 0.0
    %142 = vmatpush1.xpose.msra.mxu0 0.0
    %143 = vmatprep.subr.mxu0 0.0
    %144 = vmatpush1.xpose.msra.mxu0 0.0
    %145 = vmatprep.subr.mxu0 0.0
    %146 = vmatpush1.xpose.msra.mxu0 0.0
    %147 = vmatprep.subr.mxu0 0.0
    %148 = vmatpush1.xpose.msra.mxu0 0.0
    %149 = vmatprep.subr.mxu0 0.0
    %150 = vmatpush1.xpose.msra.mxu0 0.0
    %151 = vmatprep.mubr.f32.mxu0 0.0
    %152 = vmatmul.mubr.f32.gmra.mrb[0].mxu0 %v37
    %v153 = vpop.f32.mrb[0].mxu0
    %v154 = vadd.f32 0.0, %v153
    %v155 = vpop.f32.mrb[0].mxu0
    %156 = vdwg.mxu0
    %v157 = vsub.f32 1.0, %v154
    %v158 = vld [vmem:[%s2] sm:$0xff]
    %v159 = vld [vmem:[%s3] sm:$0x3]
    %161 = vset.pattern.permute.xlu0 0
    %162 = vperm.xlu0 %161, %v158
    %v163 = vpop.permute.xlu0 %162
    %v165 = vlaneseq
    %v166 = vshrl.u32 %v165, 7
    %v167 = vsub.s32 0, %v166
    %v168 = vrot.slane %v159, %v167
    %v169 = vsub.f32 %v163, %v168
    %v170 = vand.u32 2147483647, %v169
    %171 = vset.pattern.permute.xlu0 1
    %172 = vperm.xlu0 %171, %v158
    %v173 = vpop.permute.xlu0 %172
    %v175 = vlaneseq
    %v176 = vshrl.u32 %v175, 7
    %v177 = vsub.s32 1, %v176
    %v178 = vrot.slane %v159, %v177
    %v179 = vsub.f32 %v173, %v178
    %v180 = vand.u32 2147483647, %v179
    %v181 = vadd.f32 %v170, %v180
    %v182 = vadd.f32 %v157, %v181
    %v183 = vmul.f32 %v158, 0.5
    %v184 = vmul.f32 %v159, 0.5
    %186 = vrot.lane.b32.xlu0 %v183, 127
    %v187 = vpop.permute.xlu0 %186
    %v189 = vadd.f32 %v158, %v187
    %v191 = vrot.slane %v184, 1
    %v193 = vadd.f32 %v159, %v191
    %195 = vset.pattern.permute.xlu0 0
    %196 = vperm.xlu0 %195, %v189
    %v197 = vpop.permute.xlu0 %196
    %v199 = vlaneseq
    %v200 = vshrl.u32 %v199, 7
    %v201 = vsub.s32 0, %v200
    %v202 = vrot.slane %v193, %v201
    %v203 = vmin.f32 %v197, %v202
    %v204 = vsub.f32 %v158, %v187
    %v205 = vsub.f32 %v159, %v191
    %207 = vset.pattern.permute.xlu0 0
    %208 = vperm.xlu0 %207, %v204
    %v209 = vpop.permute.xlu0 %208
    %v211 = vlaneseq
    %v212 = vshrl.u32 %v211, 7
    %v213 = vsub.s32 0, %v212
    %v214 = vrot.slane %v205, %v213
    %v215 = vmax.f32 %v209, %v214
    %v216 = vsub.f32 %v203, %v215
    %v217 = vmax.f32 %v216, 0.0
    %v218 = vsub.f32 %v217, %v216
    %v219 = vadd.f32 %v173, %v178
    %v220 = vsub.f32 %v219, %v217
    %v221 = vsub.f32 %v219, %v216
    %v222 = vrcp.pop %v220
    %v223 = vrcp.pop %v221
    %vm224 = vcmp.gt.f32.partialorder %v220, 0.0
    %v225 = vmul.f32 %v217, %v222
    %v226 = vsel %vm224, %v225, 0.0
    %vm227 = vcmp.gt.f32.partialorder %v221, 0.0
    %v228 = vmul.f32 %v218, %v223
    %v229 = vsel %vm227, %v228, 0.0
    %v230 = vsub.f32 %v226, %v229
    %v231 = vsub.f32 %v182, %v230
    %232 = vst [vmem:[#allocation2] sm:$0xff] %v231
    // Predicated region
    $region18: #{_cost_matrix_padded.1} parent=1 // pred_check
      _
    $region19: #{_cost_matrix_padded.1} parent=1 // pred_check_branch
      %234 = sbr.rel (0) target = $region21
    $region20: #{_cost_matrix_padded.1} parent=1 // pred_region
      %s236 = ssub.s32 128, 128
      %237 = vsyncadd [#allocation3], %s236
      %s239 = sshll.u32 [#allocation2], 4
      %s240 = int_to_ptr.vmem [resolvable:$true] %s239
      %242 = dma.vmem_to_hbm [thread:$0]  %s240, 128, %s4, [#allocation3]
    $region21: #{_cost_matrix_padded.1} parent=1 // pred_fallthru
      _
    // Predicated region
    $region22: #{_cost_matrix_padded.1} parent=1 // pred_check
      _
    $region23: #{_cost_matrix_padded.1} parent=1 // pred_check_branch
      %244 = sbr.rel (0) target = $region25
    $region24: #{_cost_matrix_padded.1} parent=1 // pred_region
      %245 = dma.done [#allocation3], 128
    $region25: #{_cost_matrix_padded.1} parent=1 // pred_fallthru
      _
    %246 = vsyncpa [#allocation3], 1

</llo_original>
